<compile_context>
chip_gen: v7x
topology: tpu7x:2x2x1
jax: 0.10.0
libtpu: 0.0.40
codegen_flags: <defaults>
</compile_context>

<pallas_src>
import functools

import jax
import jax.numpy as jnp
import numpy as np
from jax.experimental import pallas as pl
from jax.experimental.pallas import tpu as pltpu


def _ceil_to(v, m):
    return -(-v // m) * m


def _sublane_for_itemsize(itemsize):
    return {4: 8, 2: 16, 1: 32}.get(itemsize, 8)


def _tpu_vmem_bytes():
    try:
        return int(pltpu.get_tpu_info().vmem_capacity_bytes)
    except Exception:
        return 128 << 20  # conservative fallback (v5e/v6e-like)


def _mixed_pool_kernel(x_ref, g_ref, o_ref, *, H_blk, W, OH_blk, OW):
    """x_ref: (n_blk, c_blk, H_blk, W)   g_ref: (1, c_blk) f32 (= sigmoid(weight))
    o_ref: (n_blk, OH_blk, OW, c_blk)."""
    # Gate is already sigmoid()'d in the wrapper; keep it as a (1, c_blk) f32
    # row (broadcasts against (n, c) results, no explicit broadcast held live).
    gate = g_ref[...].astype(jnp.float32)

    rows = []
    for i in range(OH_blk):
        # PyTorch adaptive-pool bin boundaries (floor / ceil) on the local block.
        h0 = (i * H_blk) // OH_blk
        h1 = -(-((i + 1) * H_blk) // OH_blk)
        # One lane-aligned full-width load per output row; reduce over H first.
        slab = x_ref[:, :, h0:h1, :]                              # (n, c, kh, W)
        row_max = jnp.max(slab, axis=2)                           # (n, c, W), input dtype
        row_sum = jnp.sum(slab.astype(jnp.float32), axis=2)       # (n, c, W), f32
        cols = []
        for j in range(OW):
            w0 = (j * W) // OW
            w1 = -(-((j + 1) * W) // OW)
            y_max = jnp.max(row_max[:, :, w0:w1], axis=-1).astype(jnp.float32)
            y_avg = jnp.sum(row_sum[:, :, w0:w1], axis=-1) * (
                1.0 / ((h1 - h0) * (w1 - w0))
            )
            cols.append(y_max + gate * (y_avg - y_max))           # (n, c) f32
        rows.append(jnp.stack(cols, axis=1))                      # (n, OW, c)
    # Single dense store per grid step (lane-dense along c_blk).
    o_ref[...] = jnp.stack(rows, axis=1).astype(o_ref.dtype)      # (n, OH_blk, OW, c)


def _choose_blocks(N, C, H, W, OH, itemsize, budget_bytes):
    """Pick (n_blk, c_blk, nb_h, h_blk) with padding-aware VMEM sizing.

    Constraints honored:
      * input block last-two dims: W kept full; h_blk == H or a sublane multiple.
      * gate/output blocks: c_blk == C or a multiple of 128 dividing C.
      * n_blk <= 8 and n_blk * c_blk <= 8192 (vreg-pressure bound).
      * at least 2 grid steps whenever the shapes allow it.
    """
    sublane = _sublane_for_itemsize(itemsize)
    pW = _ceil_to(W, 128)

    def plane(h_blk):  # padded VMEM bytes of one (h_blk, W) plane
        return _ceil_to(h_blk, sublane) * pW * itemsize

    # channel-block candidates (descending): full C, or 128-multiples dividing C
    c_cands = sorted({C} | {d for d in range(128, C, 128) if C % d == 0},
                     reverse=True)

    # row-band candidates (ascending): exact PyTorch bins require H % OH == 0,
    # and a partial-H block must be sublane-aligned for the (8,128) layout rule.
    nbh_cands = [1]
    if OH > 1 and H % OH == 0:
        nbh_cands = [1] + [d for d in range(2, OH + 1)
                           if OH % d == 0 and (H // d) % sublane == 0]

    # 1) smallest band count whose minimal block fits the budget
    nb_h = nbh_cands[-1]
    for d in nbh_cands:
        if c_cands[-1] * plane(H // d) <= budget_bytes:
            nb_h = d
            break
    h_blk = H // nb_h

    # 2) largest c_blk that fits (bounded to keep per-bin intermediates small)
    c_blk = c_cands[-1]
    for c in c_cands:
        if c * plane(h_blk) <= budget_bytes and c <= 8192:
            c_blk = c
            break

    # 3) largest n_blk <= 8 (divisor of N) that still fits
    n_blk = 1
    for d in range(min(N, 8), 0, -1):
        if (N % d == 0 and d * c_blk * plane(h_blk) <= budget_bytes
                and d * c_blk <= 8192):
            n_blk = d
            break

    # 4) never collapse to a single grid step (megacore sharding / pipelining)
    def steps(nb, cb, nbh):
        return (N // nb) * (C // cb) * nbh

    while steps(n_blk, c_blk, nb_h) < 2:
        if n_blk > 1:
            n_blk = max(d for d in range(1, n_blk) if N % d == 0)
        elif nb_h < nbh_cands[-1]:
            nb_h = min(d for d in nbh_cands if d > nb_h)
            h_blk = H // nb_h
        elif any(c < c_blk for c in c_cands):
            c_blk = max(c for c in c_cands if c < c_blk)
        else:
            break  # N==1, minimal C block, no band split possible

    return n_blk, c_blk, nb_h, h_blk


def adaptive_mixed_pool2d(x_nchw, weight, output_size, *, block_budget_bytes=None):
    """Pallas-backed AdaptiveMixedPool2d forward. x_nchw: (N, C, H, W)."""
    if isinstance(output_size, int):
        output_size = (output_size, output_size)
    N, C, H, W = x_nchw.shape
    OH, OW = output_size
    itemsize = x_nchw.dtype.itemsize
    sublane = _sublane_for_itemsize(itemsize)

    # Generation-aware defaults (v7x: 64 MiB VMEM but ~3.2 TB/s HBM -> bigger blocks).
    vmem_phys = _tpu_vmem_bytes()
    if block_budget_bytes is None:
        block_budget_bytes = (8 << 20) if vmem_phys <= (64 << 20) else (4 << 20)
    vmem_cap = (40 << 20) if vmem_phys <= (64 << 20) else (48 << 20)

    # Precompute sigmoid(weight) in the wrapper (one tiny XLA op); keep it f32
    # and present it to the kernel as a (1, C) row.
    gate = jax.nn.sigmoid(jnp.reshape(weight, (1, -1)).astype(jnp.float32))
    if gate.shape[1] == 1:
        gate = jnp.broadcast_to(gate, (1, C))

    n_blk, c_blk, nb_h, h_blk = _choose_blocks(
        N, C, H, W, OH, itemsize, block_budget_bytes)
    oh_blk = OH // nb_h
    grid = (N // n_blk, C // c_blk, nb_h)

    # Padded VMEM footprints (what Mosaic will actually allocate).
    in_blk_bytes = n_blk * c_blk * _ceil_to(h_blk, sublane) * _ceil_to(W, 128) * itemsize
    out_blk_bytes = (n_blk * oh_blk * _ceil_to(OW, sublane)
                     * _ceil_to(c_blk, 128) * itemsize)
    gate_blk_bytes = 8 * _ceil_to(c_blk, 128) * 4
    # 2x double-buffered input/output/gate + f32 working set for the H-reduced rows.
    need = 2 * (in_blk_bytes + out_blk_bytes + gate_blk_bytes) + max(in_blk_bytes, 1 << 20)
    vmem_limit = int(min(max(need, 8 << 20), vmem_cap))
    vmem_limit = int(max(vmem_limit, need))  # never below the real requirement

    kernel = functools.partial(_mixed_pool_kernel,
                               H_blk=h_blk, W=W, OH_blk=oh_blk, OW=OW)

    cost = pl.CostEstimate(
        flops=3 * N * C * H * W,
        transcendentals=0,
        bytes_accessed=((N * C * H * W + N * C * OH * OW) * itemsize
                        + grid[0] * grid[2] * C * 4),
    )

    out_nhwc = pl.pallas_call(
        kernel,
        out_shape=jax.ShapeDtypeStruct((N, OH, OW, C), x_nchw.dtype),
        grid=grid,
        in_specs=[
            pl.BlockSpec((n_blk, c_blk, h_blk, W), lambda nb, cb, hb: (nb, cb, hb, 0)),
            pl.BlockSpec((1, c_blk), lambda nb, cb, hb: (0, cb)),
        ],
        out_specs=pl.BlockSpec((n_blk, oh_blk, OW, c_blk),
                               lambda nb, cb, hb: (nb, hb, 0, cb)),
        compiler_params=pltpu.CompilerParams(
            dimension_semantics=("parallel", "parallel", "parallel"),
            vmem_limit_bytes=vmem_limit,
        ),
        cost_estimate=cost,
    )(x_nchw, gate)

    # The pooled output is tiny (N*C*OH*OW); transposing it back to PyTorch's
    # NCHW convention is cheap (the full input is never transposed).
    return jnp.transpose(out_nhwc, (0, 3, 1, 2))


def _reference_mixed_pool(x_nchw, weight, output_size):
    """Pure-JAX reference with PyTorch adaptive-pool semantics."""
    if isinstance(output_size, int):
        output_size = (output_size, output_size)
    N, C, H, W = x_nchw.shape
    OH, OW = output_size
    gate = jax.nn.sigmoid(jnp.reshape(weight, (1, -1)).astype(jnp.float32))
    if gate.shape[1] == 1:
        gate = jnp.broadcast_to(gate, (1, C))
    rows = []
    for i in range(OH):
        h0 = (i * H) // OH
        h1 = -(-((i + 1) * H) // OH)
        cols = []
        for j in range(OW):
            w0 = (j * W) // OW
            w1 = -(-((j + 1) * W) // OW)
            blk = x_nchw[:, :, h0:h1, w0:w1].astype(jnp.float32)
            y_max = jnp.max(blk, axis=(2, 3))
            y_avg = jnp.mean(blk, axis=(2, 3))
            cols.append(y_max + gate * (y_avg - y_max))
        rows.append(jnp.stack(cols, axis=-1))
    return jnp.stack(rows, axis=-2).astype(x_nchw.dtype)  # (N, C, OH, OW)


if __name__ == "__main__":
    key = jax.random.PRNGKey(0)
    kx, kw = jax.random.split(key)

    # Small shapes consistent with the module: NCHW input, per-channel weight.
    N, C, H, W = 2, 4, 16, 16
    x = jax.random.normal(kx, (N, C, H, W), dtype=jnp.float32)
    # Module inits weight to zeros; use a deterministic nonzero init instead so
    # the per-channel gating path is actually exercised.
    weight = 0.5 * jax.random.normal(kw, (1, C, 1, 1), dtype=jnp.float32)
    weight_scalar = jnp.asarray([0.3], dtype=jnp.float32)  # the (1,) weight variant

    ok = True
    checks = [
        (x, weight, (2, 2), None, 1e-5),
        (x, weight, (3, 3), None, 1e-5),           # non-divisible (overlapping) bins
        (x, weight, (1, 1), None, 1e-5),
        (x, weight, (4, 4), 2048, 1e-5),           # tiny budget -> N, H-band grid
        (x, weight_scalar, (2, 2), None, 1e-5),
        (x.astype(jnp.bfloat16), weight, (2, 2), None, 2e-2),  # bf16 max path
    ]
    for xin, w_, osz, budget, tol in checks:
        out = adaptive_mixed_pool2d(xin, w_, osz, block_budget_bytes=budget)
        jax.block_until_ready(out)
        ref = _reference_mixed_pool(xin, w_, osz)
        got = np.asarray(out, dtype=np.float32)
        exp = np.asarray(ref, dtype=np.float32)
        if not np.allclose(got, exp, rtol=tol, atol=tol):
            ok = False
            print(f"MISMATCH at output_size={osz}, weight_shape={tuple(w_.shape)}, "
                  f"dtype={xin.dtype}, max_err={np.max(np.abs(got - exp))}")

    if ok:
        print("KERNEL_OK")
</pallas_src>

<mosaic_0001>
module attributes {stable_mosaic.version = 11 : i64} {
  func.func @_mixed_pool_kernel(%arg0: i32, %arg1: i32, %arg2: i32, %arg3: memref<1x4x16x16xf32, #tpu.memory_space<vmem>>, %arg4: memref<1x4xf32, #tpu.memory_space<vmem>>, %arg5: memref<1x2x2x4xf32, #tpu.memory_space<vmem>>) attributes {dimension_semantics = [#tpu.dimension_semantics<parallel>, #tpu.dimension_semantics<parallel>, #tpu.dimension_semantics<parallel>], iteration_bounds = array<i64: 2, 1, 1>, scalar_prefetch = 0 : i64, scratch_operands = 0 : i64, tpu.core_type = #tpu.core_type<tc>, window_params = [{transform_indices = @transform_0, window_bounds = array<i64: 1, 4, 16, 16>}, {transform_indices = @transform_1, window_bounds = array<i64: 1, 4>}, {transform_indices = @transform_2, window_bounds = array<i64: 1, 2, 2, 4>}]} {
    %c0 = arith.constant 0 : index
    %c0_0 = arith.constant 0 : index
    %0 = vector.load %arg4[%c0, %c0_0] : memref<1x4xf32, #tpu.memory_space<vmem>>, vector<1x4xf32>
    %c0_1 = arith.constant 0 : index
    %c0_2 = arith.constant 0 : index
    %c0_3 = arith.constant 0 : index
    %c0_4 = arith.constant 0 : index
    %1 = vector.load %arg3[%c0_1, %c0_2, %c0_3, %c0_4] : memref<1x4x16x16xf32, #tpu.memory_space<vmem>>, vector<1x4x8x16xf32>
    %cst = arith.constant dense<0xFF800000> : vector<1x4x16xf32>
    %2 = vector.multi_reduction <maximumf>, %1, %cst [2] : vector<1x4x8x16xf32> to vector<1x4x16xf32>
    %cst_5 = arith.constant dense<0.000000e+00> : vector<1x4x16xf32>
    %3 = vector.multi_reduction <add>, %1, %cst_5 [2] : vector<1x4x8x16xf32> to vector<1x4x16xf32>
    %4 = vector.extract_strided_slice %2 {offsets = [0, 0, 0], sizes = [1, 4, 8], strides = [1, 1, 1]} : vector<1x4x16xf32> to vector<1x4x8xf32>
    %cst_6 = arith.constant dense<0xFF800000> : vector<1x4xf32>
    %5 = vector.multi_reduction <maximumf>, %4, %cst_6 [2] : vector<1x4x8xf32> to vector<1x4xf32>
    %6 = vector.extract_strided_slice %3 {offsets = [0, 0, 0], sizes = [1, 4, 8], strides = [1, 1, 1]} : vector<1x4x16xf32> to vector<1x4x8xf32>
    %cst_7 = arith.constant dense<0.000000e+00> : vector<1x4xf32>
    %7 = vector.multi_reduction <add>, %6, %cst_7 [2] : vector<1x4x8xf32> to vector<1x4xf32>
    %cst_8 = arith.constant 1.562500e-02 : f32
    %8 = vector.broadcast %cst_8 : f32 to vector<1x4xf32>
    %9 = arith.mulf %7, %8 : vector<1x4xf32>
    %10 = arith.subf %9, %5 : vector<1x4xf32>
    %11 = arith.mulf %0, %10 : vector<1x4xf32>
    %12 = arith.addf %5, %11 : vector<1x4xf32>
    %13 = vector.extract_strided_slice %2 {offsets = [0, 0, 8], sizes = [1, 4, 8], strides = [1, 1, 1]} : vector<1x4x16xf32> to vector<1x4x8xf32>
    %cst_9 = arith.constant dense<0xFF800000> : vector<1x4xf32>
    %14 = vector.multi_reduction <maximumf>, %13, %cst_9 [2] : vector<1x4x8xf32> to vector<1x4xf32>
    %15 = vector.extract_strided_slice %3 {offsets = [0, 0, 8], sizes = [1, 4, 8], strides = [1, 1, 1]} : vector<1x4x16xf32> to vector<1x4x8xf32>
    %cst_10 = arith.constant dense<0.000000e+00> : vector<1x4xf32>
    %16 = vector.multi_reduction <add>, %15, %cst_10 [2] : vector<1x4x8xf32> to vector<1x4xf32>
    %cst_11 = arith.constant 1.562500e-02 : f32
    %17 = vector.broadcast %cst_11 : f32 to vector<1x4xf32>
    %18 = arith.mulf %16, %17 : vector<1x4xf32>
    %19 = arith.subf %18, %14 : vector<1x4xf32>
    %20 = arith.mulf %0, %19 : vector<1x4xf32>
    %21 = arith.addf %14, %20 : vector<1x4xf32>
    %22 = vector.shape_cast %12 : vector<1x4xf32> to vector<1x1x4xf32>
    %23 = vector.shape_cast %21 : vector<1x4xf32> to vector<1x1x4xf32>
    %24 = tpu.concatenate %22, %23 in 1 : vector<1x1x4xf32>, vector<1x1x4xf32> -> vector<1x2x4xf32>
    %c0_12 = arith.constant 0 : index
    %c0_13 = arith.constant 0 : index
    %c8 = arith.constant 8 : index
    %c0_14 = arith.constant 0 : index
    %25 = vector.load %arg3[%c0_12, %c0_13, %c8, %c0_14] : memref<1x4x16x16xf32, #tpu.memory_space<vmem>>, vector<1x4x8x16xf32>
    %cst_15 = arith.constant dense<0xFF800000> : vector<1x4x16xf32>
    %26 = vector.multi_reduction <maximumf>, %25, %cst_15 [2] : vector<1x4x8x16xf32> to vector<1x4x16xf32>
    %cst_16 = arith.constant dense<0.000000e+00> : vector<1x4x16xf32>
    %27 = vector.multi_reduction <add>, %25, %cst_16 [2] : vector<1x4x8x16xf32> to vector<1x4x16xf32>
    %28 = vector.extract_strided_slice %26 {offsets = [0, 0, 0], sizes = [1, 4, 8], strides = [1, 1, 1]} : vector<1x4x16xf32> to vector<1x4x8xf32>
    %cst_17 = arith.constant dense<0xFF800000> : vector<1x4xf32>
    %29 = vector.multi_reduction <maximumf>, %28, %cst_17 [2] : vector<1x4x8xf32> to vector<1x4xf32>
    %30 = vector.extract_strided_slice %27 {offsets = [0, 0, 0], sizes = [1, 4, 8], strides = [1, 1, 1]} : vector<1x4x16xf32> to vector<1x4x8xf32>
    %cst_18 = arith.constant dense<0.000000e+00> : vector<1x4xf32>
    %31 = vector.multi_reduction <add>, %30, %cst_18 [2] : vector<1x4x8xf32> to vector<1x4xf32>
    %cst_19 = arith.constant 1.562500e-02 : f32
    %32 = vector.broadcast %cst_19 : f32 to vector<1x4xf32>
    %33 = arith.mulf %31, %32 : vector<1x4xf32>
    %34 = arith.subf %33, %29 : vector<1x4xf32>
    %35 = arith.mulf %0, %34 : vector<1x4xf32>
    %36 = arith.addf %29, %35 : vector<1x4xf32>
    %37 = vector.extract_strided_slice %26 {offsets = [0, 0, 8], sizes = [1, 4, 8], strides = [1, 1, 1]} : vector<1x4x16xf32> to vector<1x4x8xf32>
    %cst_20 = arith.constant dense<0xFF800000> : vector<1x4xf32>
    %38 = vector.multi_reduction <maximumf>, %37, %cst_20 [2] : vector<1x4x8xf32> to vector<1x4xf32>
    %39 = vector.extract_strided_slice %27 {offsets = [0, 0, 8], sizes = [1, 4, 8], strides = [1, 1, 1]} : vector<1x4x16xf32> to vector<1x4x8xf32>
    %cst_21 = arith.constant dense<0.000000e+00> : vector<1x4xf32>
    %40 = vector.multi_reduction <add>, %39, %cst_21 [2] : vector<1x4x8xf32> to vector<1x4xf32>
    %cst_22 = arith.constant 1.562500e-02 : f32
    %41 = vector.broadcast %cst_22 : f32 to vector<1x4xf32>
    %42 = arith.mulf %40, %41 : vector<1x4xf32>
    %43 = arith.subf %42, %38 : vector<1x4xf32>
    %44 = arith.mulf %0, %43 : vector<1x4xf32>
    %45 = arith.addf %38, %44 : vector<1x4xf32>
    %46 = vector.shape_cast %36 : vector<1x4xf32> to vector<1x1x4xf32>
    %47 = vector.shape_cast %45 : vector<1x4xf32> to vector<1x1x4xf32>
    %48 = tpu.concatenate %46, %47 in 1 : vector<1x1x4xf32>, vector<1x1x4xf32> -> vector<1x2x4xf32>
    %49 = vector.shape_cast %24 : vector<1x2x4xf32> to vector<1x1x2x4xf32>
    %50 = vector.shape_cast %48 : vector<1x2x4xf32> to vector<1x1x2x4xf32>
    %51 = tpu.concatenate %49, %50 in 1 : vector<1x1x2x4xf32>, vector<1x1x2x4xf32> -> vector<1x2x2x4xf32>
    %c0_23 = arith.constant 0 : index
    %c0_24 = arith.constant 0 : index
    %c0_25 = arith.constant 0 : index
    %c0_26 = arith.constant 0 : index
    %52 = vector.load %arg5[%c0_23, %c0_24, %c0_25, %c0_26] : memref<1x2x2x4xf32, #tpu.memory_space<vmem>>, vector<1x2x2x4xf32>
    tpu.vector_store %arg5[%c0_23, %c0_24, %c0_25, %c0_26], %51 {strides = array<i32>} : memref<1x2x2x4xf32, #tpu.memory_space<vmem>>, vector<1x2x2x4xf32>,
    return
  }
  func.func @transform_0(%arg0: i32, %arg1: i32, %arg2: i32) -> (i32, i32, i32, i32) {
    %c0_i32 = arith.constant 0 : i32
    %c0_i32_0 = arith.constant 0 : i32
    return %arg0, %arg1, %arg2, %c0_i32 : i32, i32, i32, i32
  }
  func.func @transform_1(%arg0: i32, %arg1: i32, %arg2: i32) -> (i32, i32) {
    %c0_i32 = arith.constant 0 : i32
    %c0_i32_0 = arith.constant 0 : i32
    return %c0_i32, %arg1 : i32, i32
  }
  func.func @transform_2(%arg0: i32, %arg1: i32, %arg2: i32) -> (i32, i32, i32, i32) {
    %c0_i32 = arith.constant 0 : i32
    %c0_i32_0 = arith.constant 0 : i32
    return %arg0, %arg2, %c0_i32, %arg1 : i32, i32, i32, i32
  }
}

</mosaic_0001>

<llo_original>
// kernel: tpu_custom_call.1
$region0: #{tpu_custom_call.1}
  #allocation0 [shape = 'u32[]', space=smem, size = 0x4, offset = 0x4, fixed_abs, tag = 'smem constant byte address 0x4 - core index']
  #allocation1 [shape = 'u32[144,128]{1,0:T(1,128)}', space=vmem, size = 0x12000, scoped, tag = 'internal scratch']
  %s0 = inlined_call_operand.hbm [shape: f32[2,4,16,16], index: 0, kind: input, shape index: {}]
  %s1 = inlined_call_operand.vmem [shape: f32[1,4], index: 1, kind: input, shape index: {}]
  %s2 = inlined_call_operand.hbm [shape: f32[2,2,2,4], index: 2, kind: output, shape index: {}]
  %s3 = sld [smem:[#allocation0]]
  $region45: #{tpu_custom_call.1} parent=0
    _
  %s5 = ssub.s32 1, %s3
  %s6 = scalar_select 0, %s5, %s3
  $region1: #{tpu_custom_call.1} parent=0
    #allocation2 [shape = 'u8[65536]{0}', space=vmem, size = 0x10000, scoped, tag = 'input window, operand 0']
    #allocation3 [shape = 's32[2]{0}', space=sflag, size = 0x8, scoped, tag = 'scoped memory for tpu_custom_call.1']
    #allocation4 [shape = 's32[2]{0}', space=sflag, size = 0x8, scoped, tag = 'scoped memory for tpu_custom_call.1']
    #allocation5 [shape = 'u8[4096]{0}', space=vmem, size = 0x1000, scoped, tag = 'output window, operand 0']
    %7 = vsyncpa [#allocation3], 0
    %s8 = scalar_lea.sflag [#allocation3], 1
    %9 = vsyncpa %s8, 0
    %10 = vsyncpa [#allocation4], 0
    %s11 = scalar_lea.sflag [#allocation4], 1
    %12 = vsyncpa %s11, 0
    loop: start=0, step=1, limit=4
    $region2: #{tpu_custom_call.1} parent=1 // loop_pre_header
      _
    $region3: #{tpu_custom_call.1} parent=1 // loop_header
      %s14 = sphi 0, %s18
      %p15 = scmp.ge.s32.totalorder %s14, 4
      %s21 = sphi 0, %s40
      %s22 = sphi 0, %s36
      %s23 = sphi 0, %s32
      %s24 = sphi 0, %s21
      %s25 = sphi 0, %s22
      %s26 = sphi 0, %s23
      %s27 = sphi 0, %s24
      %s28 = sphi 0, %s25
      %s29 = sphi 0, %s26
      %s47 = sphi 0, %s49
      %s50 = sphi 0, %s47
      %s51 = sphi 0, %s50
      %s67 = sphi 0, %s51
      %s73 = sphi 0, %s75
      %s76 = sphi 0, %s73
      %s77 = sphi 0, %s76
      %s93 = sphi 0, %s77
      %s103 = sphi 0, %s105
      %s106 = sphi 0, %s103
      %s107 = sphi 0, %s106
      %s123 = sphi 0, %s107
    $region4: #{tpu_custom_call.1} parent=1 // loop_header_branch
      %17 = sbr.rel (%p15) target = $region8
    $region5: #{tpu_custom_call.1} parent=1 // loop_body
      %s19 = ssub.s32 %s14, 1
      %s20 = ssub.s32 %s14, 2
      %s30 = sadd.s32 1, %s23
      %p31 = scmp.ge.s32.totalorder %s30, 1
      %s32 = scalar_select %p31, 0, %s30
      %s33 = sadd.s32 1, %s22
      %s34 = scalar_select %p31, %s33, %s22
      %p35 = scmp.ge.s32.totalorder %s34, 1
      %s36 = scalar_select %p35, 0, %s34
      %s37 = sadd.s32 1, %s21
      %s38 = scalar_select %p35, %s37, %s21
      %p39 = scmp.ge.s32.totalorder %s38, 2
      %s40 = scalar_select %p39, 0, %s38
      %s41 = ssub.s32 %s21, %s40
      %s42 = ssub.s32 %s22, %s36
      %s43 = sor.u32 %s41, %s42
      %s44 = ssub.s32 %s23, %s32
      %s45 = sor.u32 %s43, %s44
      %p46 = scmp.eq.s32.totalorder %s45, 0
      %s48 = sadd.s32 %s47, 1
      %s49 = scalar_select %p46, %s47, %s48
      %p52 = pneg %p46
      %p53 = scmp.eq.s32.totalorder %s14, 1
      %p54 = por %p52, %p53
      %p55 = scmp.ne.s32.totalorder %s47, %s50
      %p56 = scmp.eq.s32.totalorder %s14, 0
      %p57 = por %p55, %p56
      %p58 = scmp.ne.s32.totalorder %s47, %s50
      %p59 = scmp.eq.s32.totalorder %s19, 1
      %p60 = por %p58, %p59
      %p61 = scmp.ne.s32.totalorder %s50, %s51
      %p62 = scmp.eq.s32.totalorder %s19, 0
      %p63 = por %p61, %p62
      %p64 = scmp.ne.s32.totalorder %s50, %s51
      %p65 = scmp.eq.s32.totalorder %s20, 1
      %p66 = por %p64, %p65
      %p68 = scmp.ne.s32.totalorder %s51, %s67
      %p69 = scmp.eq.s32.totalorder %s20, 0
      %p70 = por %p68, %p69
      %s71 = ssub.s32 %s22, %s36
      %p72 = scmp.eq.s32.totalorder %s71, 0
      %s74 = sadd.s32 %s73, 1
      %s75 = scalar_select %p72, %s73, %s74
      %p78 = pneg %p72
      %p79 = scmp.eq.s32.totalorder %s14, 1
      %p80 = por %p78, %p79
      %p81 = scmp.ne.s32.totalorder %s73, %s76
      %p82 = scmp.eq.s32.totalorder %s14, 0
      %p83 = por %p81, %p82
      %p84 = scmp.ne.s32.totalorder %s73, %s76
      %p85 = scmp.eq.s32.totalorder %s19, 1
      %p86 = por %p84, %p85
      %p87 = scmp.ne.s32.totalorder %s76, %s77
      %p88 = scmp.eq.s32.totalorder %s19, 0
      %p89 = por %p87, %p88
      %p90 = scmp.ne.s32.totalorder %s76, %s77
      %p91 = scmp.eq.s32.totalorder %s20, 1
      %p92 = por %p90, %p91
      %p94 = scmp.ne.s32.totalorder %s77, %s93
      %p95 = scmp.eq.s32.totalorder %s20, 0
      %p96 = por %p94, %p95
      %s97 = ssub.s32 %s21, %s40
      %s98 = ssub.s32 %s23, %s32
      %s99 = sor.u32 %s97, %s98
      %s100 = ssub.s32 %s22, %s36
      %s101 = sor.u32 %s99, %s100
      %p102 = scmp.eq.s32.totalorder %s101, 0
      %s104 = sadd.s32 %s103, 1
      %s105 = scalar_select %p102, %s103, %s104
      %p108 = pneg %p102
      %p109 = scmp.eq.s32.totalorder %s14, 1
      %p110 = por %p108, %p109
      %p111 = scmp.ne.s32.totalorder %s103, %s106
      %p112 = scmp.eq.s32.totalorder %s14, 0
      %p113 = por %p111, %p112
      %p114 = scmp.ne.s32.totalorder %s103, %s106
      %p115 = scmp.eq.s32.totalorder %s19, 1
      %p116 = por %p114, %p115
      %p117 = scmp.ne.s32.totalorder %s106, %s107
      %p118 = scmp.eq.s32.totalorder %s19, 0
      %p119 = por %p117, %p118
      %p120 = scmp.ne.s32.totalorder %s106, %s107
      %p121 = scmp.eq.s32.totalorder %s20, 1
      %p122 = por %p120, %p121
      %p124 = scmp.ne.s32.totalorder %s107, %s123
      %p125 = scmp.eq.s32.totalorder %s20, 0
      %p126 = por %p124, %p125
      %p127 = scmp.le.s32.totalorder 1, %s14
      %p128 = scmp.lt.s32.totalorder %s14, 3
      %p129 = pnand %p127, %p128
      %p130 = pneg %p129
      // Predicated region
      $region9: #{tpu_custom_call.1} parent=5 // pred_check
        _
      $region10: #{tpu_custom_call.1} parent=5 // pred_check_branch
        %132 = sbr.rel (%p129) target = $region12
      $region11: #{tpu_custom_call.1} parent=5 // pred_region
        %s133 = ssub.s32 %s14, 1
        // Predicated region
        $region13: #{tpu_custom_call.1} parent=11 // pred_check
          %p134 = pneg %p89
        $region14: #{tpu_custom_call.1} parent=11 // pred_check_branch
          %136 = sbr.rel (%p134) target = $region16
        $region15: #{tpu_custom_call.1} parent=11 // pred_region
          %p137 = scmp.lt.s32.totalorder %s25, 0
          %s138 = scalar_select %p137, %s25, 0
          %s139 = scalar_lea.vmem %s1, %s138
        $region16: #{tpu_custom_call.1} parent=11 // pred_fallthru
          _
      $region12: #{tpu_custom_call.1} parent=5 // pred_fallthru
        _
      %p140 = scmp.lt.s32.totalorder %s14, 2
      // Predicated region
      $region17: #{tpu_custom_call.1} parent=5 // pred_check
        %p141 = pneg %p140
      $region18: #{tpu_custom_call.1} parent=5 // pred_check_branch
        %143 = sbr.rel (%p141) target = $region20
      $region19: #{tpu_custom_call.1} parent=5 // pred_region
        // Predicated region
        $region21: #{tpu_custom_call.1} parent=19 // pred_check
          %p144 = pneg %p57
        $region22: #{tpu_custom_call.1} parent=19 // pred_check_branch
          %146 = sbr.rel (%p144) target = $region24
        $region23: #{tpu_custom_call.1} parent=19 // pred_region
          %s147 = sand.u32 %s47, 1
          %s148 = scalar_lea.sflag [#allocation3], %s147
          %s149 = sand.u32 %s47, 1
          %s150 = smul.addr %s149, 64
          %s151 = scalar_lea.vmem [#allocation2], %s150
          %s152 = smul.u32 4, %s22
          %s153 = smul.u32 2, %s23
          %s155 = ssub.s32 1024, 1024
          %156 = vsyncadd %s148, %s155
          %s157 = smul.addr %s152, 2
          %s158 = sadd.s32 %s153, %s157
          %s159 = smul.addr %s21, 8
          %s160 = sadd.s32 %s158, %s159
          %s161 = smul.addr %s160, 128
          %s162 = scalar_lea.hbm %s0, %s161
          %s163 = sshll.u32 %s151, 4
          %s164 = int_to_ptr.vmem [resolvable:$true] %s163
          %169 = dma.hbm_to_vmem [thread:$0]  %s162, 1024, %s164, %s148, 128, 128, 8
        $region24: #{tpu_custom_call.1} parent=19 // pred_fallthru
          _
      $region20: #{tpu_custom_call.1} parent=5 // pred_fallthru
        _
      %p170 = scmp.le.s32.totalorder 1, %s14
      %p171 = scmp.lt.s32.totalorder %s14, 3
      %p172 = pnand %p170, %p171
      %p173 = pneg %p172
      // Predicated region
      $region25: #{tpu_custom_call.1} parent=5 // pred_check
        _
      $region26: #{tpu_custom_call.1} parent=5 // pred_check_branch
        %175 = sbr.rel (%p172) target = $region28
      $region27: #{tpu_custom_call.1} parent=5 // pred_region
        %s176 = ssub.s32 %s14, 1
        %s177 = sand.u32 %s50, 1
        %s178 = scalar_lea.sflag [#allocation3], %s177
        %s179 = sand.u32 %s50, 1
        %s180 = smul.addr %s179, 64
        %s181 = scalar_lea.vmem [#allocation2], %s180
        // Predicated region
        $region29: #{tpu_custom_call.1} parent=27 // pred_check
          %p182 = pneg %p63
        $region30: #{tpu_custom_call.1} parent=27 // pred_check_branch
          %184 = sbr.rel (%p182) target = $region32
        $region31: #{tpu_custom_call.1} parent=27 // pred_region
          %185 = dma.done %s178, 1024
        $region32: #{tpu_custom_call.1} parent=27 // pred_fallthru
          _
        %s186 = sand.u32 %s50, 1
        %s187 = scalar_lea.sflag [#allocation3], %s186
        %s188 = sand.u32 %s50, 1
        %s189 = smul.addr %s188, 64
        %s190 = scalar_lea.vmem [#allocation2], %s189
        %p191 = pneg %p63
        %p192 = pneg %p60
        %p193 = scmp.lt.s32.totalorder %s25, 0
        %s194 = scalar_select %p193, %s25, 0
        %s195 = scalar_lea.vmem %s1, %s194
        %p196 = pneg %p89
        %p197 = pneg %p86
        %p198 = pneg %p119
        %p199 = pneg %p116
        %s200 = sand.u32 %s106, 1
        %s201 = scalar_lea.sflag [#allocation4], %s200
        %s202 = sand.u32 %s106, 1
        %s203 = smul.addr %s202, 4
        %s204 = scalar_lea.vmem [#allocation5], %s203
        %s205 = smul.u32 4, %s25
        %s206 = smul.u32 2, %s26
        %p207 = scmp.lt.s32.totalorder %s25, 0
        %s208 = scalar_select %p207, %s25, 0
        %s209 = scalar_lea.vmem %s1, %s208
        %s210 = smul.u32 2, %s26
        %v211 = vld [vmem:[%s209] sm:$0x1]
        %v212 = vld [vmem:[%s181] sm:$0xff]
        %v213 = vld [vmem:[%s181 + $0x10] sm:$0xff]
        %v214 = vld [vmem:[%s181 + $0x20] sm:$0xff]
        %v215 = vld [vmem:[%s181 + $0x30] sm:$0xff]
        %vm216 = vcmask 130048
        %v217 = vsel %vm216, %v212, -inf
        %v218 = vrot.slane %v217, 4
        %v219 = vmax.f32 %v217, %v218
        %v220 = vrot.slane %v219, 2
        %v221 = vmax.f32 %v219, %v220
        %v222 = vrot.slane %v221, 1
        %v223 = vmax.f32 %v221, %v222
        %v224 = vsel %vm216, %v213, -inf
        %v225 = vrot.slane %v224, 4
        %v226 = vmax.f32 %v224, %v225
        %v227 = vrot.slane %v226, 2
        %v228 = vmax.f32 %v226, %v227
        %v229 = vrot.slane %v228, 1
        %v230 = vmax.f32 %v228, %v229
        %v231 = vsel %vm216, %v214, -inf
        %v232 = vrot.slane %v231, 4
        %v233 = vmax.f32 %v231, %v232
        %v234 = vrot.slane %v233, 2
        %v235 = vmax.f32 %v233, %v234
        %v236 = vrot.slane %v235, 1
        %v237 = vmax.f32 %v235, %v236
        %v238 = vsel %vm216, %v215, -inf
        %v239 = vrot.slane %v238, 4
        %v240 = vmax.f32 %v238, %v239
        %v241 = vrot.slane %v240, 2
        %v242 = vmax.f32 %v240, %v241
        %v243 = vrot.slane %v242, 1
        %v244 = vmax.f32 %v242, %v243
        %v245 = vsel %vm216, %v212, 0.0
        %v246 = vrot.slane %v245, 4
        %v247 = vadd.f32 %v245, %v246
        %v248 = vrot.slane %v247, 2
        %v249 = vadd.f32 %v247, %v248
        %v250 = vrot.slane %v249, 1
        %v251 = vadd.f32 %v249, %v250
        %v252 = vsel %vm216, %v213, 0.0
        %v253 = vrot.slane %v252, 4
        %v254 = vadd.f32 %v252, %v253
        %v255 = vrot.slane %v254, 2
        %v256 = vadd.f32 %v254, %v255
        %v257 = vrot.slane %v256, 1
        %v258 = vadd.f32 %v256, %v257
        %v259 = vsel %vm216, %v214, 0.0
        %v260 = vrot.slane %v259, 4
        %v261 = vadd.f32 %v259, %v260
        %v262 = vrot.slane %v261, 2
        %v263 = vadd.f32 %v261, %v262
        %v264 = vrot.slane %v263, 1
        %v265 = vadd.f32 %v263, %v264
        %v266 = vsel %vm216, %v215, 0.0
        %v267 = vrot.slane %v266, 4
        %v268 = vadd.f32 %v266, %v267
        %v269 = vrot.slane %v268, 2
        %v270 = vadd.f32 %v268, %v269
        %v271 = vrot.slane %v270, 1
        %v272 = vadd.f32 %v270, %v271
        %vm277 = vcmask 1041409
        %v278 = vsel %vm277, %v230, %v223
        %vm279 = vcmask 1042434
        %v280 = vsel %vm279, %v237, %v278
        %vm281 = vcmask 1043459
        %v282 = vsel %vm281, %v244, %v280
        %vm284 = vcmask 60416
        %v285 = vsel %vm284, %v282, -inf
        %286 = vmax.xlane.f32.xlu0 %v285
        %v287 = vpop.xlane.xlu0 %286
        %v292 = vsel %vm277, %v258, %v251
        %v293 = vsel %vm279, %v265, %v292
        %v294 = vsel %vm281, %v272, %v293
        %v296 = vsel %vm284, %v294, 0.0
        %297 = vadd.xlane.f32.xlu0 %v296
        %v298 = vpop.xlane.xlu0 %297
        %v299 = vmul.f32 %v298, 0.015625
        %v300 = vsub.f32 %v299, %v287
        %v302 = vlaneseq
        %v303 = vshrl.u32 %v302, 7
        %v304 = vsub.s32 0, %v303
        %v305 = vrot.slane %v300, %v304
        %v306 = vlaneseq
        %v307 = vshrl.u32 %v306, 7
        %v308 = vsub.s32 1, %v307
        %v309 = vrot.slane %v300, %v308
        %v310 = vlaneseq
        %v311 = vshrl.u32 %v310, 7
        %v312 = vsub.s32 2, %v311
        %v313 = vrot.slane %v300, %v312
        %v314 = vlaneseq
        %v315 = vshrl.u32 %v314, 7
        %v316 = vsub.s32 3, %v315
        %v317 = vrot.slane %v300, %v316
        %v318 = vcombine.low %v305, %v309
        %v319 = vcombine.low %v313, %v317
        %v321 = vunpack.c.l.s4 1966171168
        %v322 = vunpack.c.0.s8 %v321
        %v323 = vlaneseq
        %v324 = vshrl.u32 %v323, 7
        %v325 = vsub.s32 %v322, %v324
        %v326 = vrot.slane %v318, %v325
        %v328 = vunpack.c.l.s4 1966171168
        %v329 = vunpack.c.0.s8 %v328
        %v330 = vlaneseq
        %v331 = vshrl.u32 %v330, 7
        %v332 = vsub.s32 %v329, %v331
        %v333 = vrot.slane %v319, %v332
        %v334 = vcombine.low %v326, %v333
        %v336 = vunpack.c.l.s4 1966171168
        %v337 = vunpack.c.0.s8 %v336
        %v338 = vlaneseq
        %v339 = vshrl.u32 %v338, 7
        %v340 = vsub.s32 %v337, %v339
        %v341 = vrot.slane %v334, %v340
        %342 = vset.pattern.permute.xlu0 0
        %343 = vperm.xlu0 %342, %v341
        %v344 = vpop.permute.xlu0 %343
        %v345 = vlaneseq
        %v346 = vand.u32 %v345, 127
        %v347 = vlaneseq
        %v348 = vshrl.u32 %v347, 7
        %v349 = vsub.s32 %v346, %v348
        %v350 = vrot.slane %v344, %v349
        %v352 = vunpack.c.l.s4 1966171168
        %v353 = vunpack.c.0.s8 %v352
        %v354 = vlaneseq
        %v355 = vshrl.u32 %v354, 7
        %v356 = vsub.s32 %v353, %v355
        %v357 = vrot.slane %v350, %v356
        %v359 = vunpack.c.l.s4 1966171168
        %v360 = vunpack.c.0.s8 %v359
        %v361 = vlaneseq
        %v362 = vshrl.u32 %v361, 7
        %v363 = vsub.s32 %v360, %v362
        %v364 = vrot.slane %v357, %v363
        %v366 = vmul.f32 %v211, %v364
        %v368 = vlaneseq
        %v369 = vshrl.u32 %v368, 7
        %v370 = vsub.s32 0, %v369
        %v371 = vrot.slane %v366, %v370
        %373 = vbcast.lane.b32.xlu0 %v371, 256
        %v374 = vpop.permute.xlu0 %373
        %v376 = vadd.f32 %v287, %v374
        %vm377 = vcmask 126016
        %v378 = vsel %vm377, %v282, -inf
        %379 = vmax.xlane.f32.xlu0 %v378
        %v380 = vpop.xlane.xlu0 %379
        %381 = vrot.lane.b32.xlu0 %v294, 120
        %v382 = vpop.permute.xlu0 %381
        %v384 = vsel %vm284, %v382, 0.0
        %385 = vadd.xlane.f32.xlu0 %v384
        %v386 = vpop.xlane.xlu0 %385
        %v387 = vmul.f32 %v386, 0.015625
        %v388 = vsub.f32 %v387, %v380
        %v390 = vlaneseq
        %v391 = vshrl.u32 %v390, 7
        %v392 = vsub.s32 0, %v391
        %v393 = vrot.slane %v388, %v392
        %v394 = vlaneseq
        %v395 = vshrl.u32 %v394, 7
        %v396 = vsub.s32 1, %v395
        %v397 = vrot.slane %v388, %v396
        %v398 = vlaneseq
        %v399 = vshrl.u32 %v398, 7
        %v400 = vsub.s32 2, %v399
        %v401 = vrot.slane %v388, %v400
        %v402 = vlaneseq
        %v403 = vshrl.u32 %v402, 7
        %v404 = vsub.s32 3, %v403
        %v405 = vrot.slane %v388, %v404
        %v406 = vcombine.low %v393, %v397
        %v407 = vcombine.low %v401, %v405
        %v409 = vunpack.c.l.s4 1966171168
        %v410 = vunpack.c.0.s8 %v409
        %v411 = vlaneseq
        %v412 = vshrl.u32 %v411, 7
        %v413 = vsub.s32 %v410, %v412
        %v414 = vrot.slane %v406, %v413
        %v416 = vunpack.c.l.s4 1966171168
        %v417 = vunpack.c.0.s8 %v416
        %v418 = vlaneseq
        %v419 = vshrl.u32 %v418, 7
        %v420 = vsub.s32 %v417, %v419
        %v421 = vrot.slane %v407, %v420
        %v422 = vcombine.low %v414, %v421
        %v424 = vunpack.c.l.s4 1966171168
        %v425 = vunpack.c.0.s8 %v424
        %v426 = vlaneseq
        %v427 = vshrl.u32 %v426, 7
        %v428 = vsub.s32 %v425, %v427
        %v429 = vrot.slane %v422, %v428
        %430 = vset.pattern.permute.xlu0 0
        %431 = vperm.xlu0 %430, %v429
        %v432 = vpop.permute.xlu0 %431
        %v433 = vlaneseq
        %v434 = vshrl.u32 %v433, 7
        %v435 = vsub.s32 %v346, %v434
        %v436 = vrot.slane %v432, %v435
        %v438 = vunpack.c.l.s4 1966171168
        %v439 = vunpack.c.0.s8 %v438
        %v440 = vlaneseq
        %v441 = vshrl.u32 %v440, 7
        %v442 = vsub.s32 %v439, %v441
        %v443 = vrot.slane %v436, %v442
        %v445 = vunpack.c.l.s4 1966171168
        %v446 = vunpack.c.0.s8 %v445
        %v447 = vlaneseq
        %v448 = vshrl.u32 %v447, 7
        %v449 = vsub.s32 %v446, %v448
        %v450 = vrot.slane %v443, %v449
        %v452 = vmul.f32 %v211, %v450
        %v454 = vlaneseq
        %v455 = vshrl.u32 %v454, 7
        %v456 = vsub.s32 0, %v455
        %v457 = vrot.slane %v452, %v456
        %459 = vbcast.lane.b32.xlu0 %v457, 256
        %v460 = vpop.permute.xlu0 %459
        %v462 = vadd.f32 %v380, %v460
        %464 = vset.pattern.permute.xlu0 0
        %465 = vperm.xlu0 %464, %v376
        %v466 = vpop.permute.xlu0 %465
        %v467 = vlaneseq
        %v468 = vshrl.u32 %v467, 7
        %v469 = vsub.s32 %v346, %v468
        %v470 = vrot.slane %v466, %v469
        %473 = vset.pattern.permute.xlu0 0
        %474 = vperm.xlu0 %473, %v462
        %v475 = vpop.permute.xlu0 %474
        %v476 = vlaneseq
        %v477 = vshrl.u32 %v476, 7
        %v478 = vsub.s32 %v346, %v477
        %v479 = vrot.slane %v475, %v478
        %vm481 = vcmask 1040384
        %v482 = vsel %vm481, %v470, %v479
        %v483 = vld [vmem:[%s181 + $0x8] sm:$0xff]
        %v484 = vld [vmem:[%s181 + $0x18] sm:$0xff]
        %v485 = vld [vmem:[%s181 + $0x28] sm:$0xff]
        %v486 = vld [vmem:[%s181 + $0x38] sm:$0xff]
        %v487 = vsel %vm216, %v483, -inf
        %v488 = vrot.slane %v487, 4
        %v489 = vmax.f32 %v487, %v488
        %v490 = vrot.slane %v489, 2
        %v491 = vmax.f32 %v489, %v490
        %v492 = vrot.slane %v491, 1
        %v493 = vmax.f32 %v491, %v492
        %v494 = vsel %vm216, %v484, -inf
        %v495 = vrot.slane %v494, 4
        %v496 = vmax.f32 %v494, %v495
        %v497 = vrot.slane %v496, 2
        %v498 = vmax.f32 %v496, %v497
        %v499 = vrot.slane %v498, 1
        %v500 = vmax.f32 %v498, %v499
        %v501 = vsel %vm216, %v485, -inf
        %v502 = vrot.slane %v501, 4
        %v503 = vmax.f32 %v501, %v502
        %v504 = vrot.slane %v503, 2
        %v505 = vmax.f32 %v503, %v504
        %v506 = vrot.slane %v505, 1
        %v507 = vmax.f32 %v505, %v506
        %v508 = vsel %vm216, %v486, -inf
        %v509 = vrot.slane %v508, 4
        %v510 = vmax.f32 %v508, %v509
        %v511 = vrot.slane %v510, 2
        %v512 = vmax.f32 %v510, %v511
        %v513 = vrot.slane %v512, 1
        %v514 = vmax.f32 %v512, %v513
        %v515 = vsel %vm216, %v483, 0.0
        %v516 = vrot.slane %v515, 4
        %v517 = vadd.f32 %v515, %v516
        %v518 = vrot.slane %v517, 2
        %v519 = vadd.f32 %v517, %v518
        %v520 = vrot.slane %v519, 1
        %v521 = vadd.f32 %v519, %v520
        %v522 = vsel %vm216, %v484, 0.0
        %v523 = vrot.slane %v522, 4
        %v524 = vadd.f32 %v522, %v523
        %v525 = vrot.slane %v524, 2
        %v526 = vadd.f32 %v524, %v525
        %v527 = vrot.slane %v526, 1
        %v528 = vadd.f32 %v526, %v527
        %v529 = vsel %vm216, %v485, 0.0
        %v530 = vrot.slane %v529, 4
        %v531 = vadd.f32 %v529, %v530
        %v532 = vrot.slane %v531, 2
        %v533 = vadd.f32 %v531, %v532
        %v534 = vrot.slane %v533, 1
        %v535 = vadd.f32 %v533, %v534
        %v536 = vsel %vm216, %v486, 0.0
        %v537 = vrot.slane %v536, 4
        %v538 = vadd.f32 %v536, %v537
        %v539 = vrot.slane %v538, 2
        %v540 = vadd.f32 %v538, %v539
        %v541 = vrot.slane %v540, 1
        %v542 = vadd.f32 %v540, %v541
        %v547 = vsel %vm277, %v500, %v493
        %v548 = vsel %vm279, %v507, %v547
        %v549 = vsel %vm281, %v514, %v548
        %v551 = vsel %vm284, %v549, -inf
        %552 = vmax.xlane.f32.xlu0 %v551
        %v553 = vpop.xlane.xlu0 %552
        %v558 = vsel %vm277, %v528, %v521
        %v559 = vsel %vm279, %v535, %v558
        %v560 = vsel %vm281, %v542, %v559
        %v562 = vsel %vm284, %v560, 0.0
        %563 = vadd.xlane.f32.xlu0 %v562
        %v564 = vpop.xlane.xlu0 %563
        %v565 = vmul.f32 %v564, 0.015625
        %v566 = vsub.f32 %v565, %v553
        %v568 = vlaneseq
        %v569 = vshrl.u32 %v568, 7
        %v570 = vsub.s32 0, %v569
        %v571 = vrot.slane %v566, %v570
        %v572 = vlaneseq
        %v573 = vshrl.u32 %v572, 7
        %v574 = vsub.s32 1, %v573
        %v575 = vrot.slane %v566, %v574
        %v576 = vlaneseq
        %v577 = vshrl.u32 %v576, 7
        %v578 = vsub.s32 2, %v577
        %v579 = vrot.slane %v566, %v578
        %v580 = vlaneseq
        %v581 = vshrl.u32 %v580, 7
        %v582 = vsub.s32 3, %v581
        %v583 = vrot.slane %v566, %v582
        %v584 = vcombine.low %v571, %v575
        %v585 = vcombine.low %v579, %v583
        %v587 = vunpack.c.l.s4 1966171168
        %v588 = vunpack.c.0.s8 %v587
        %v589 = vlaneseq
        %v590 = vshrl.u32 %v589, 7
        %v591 = vsub.s32 %v588, %v590
        %v592 = vrot.slane %v584, %v591
        %v594 = vunpack.c.l.s4 1966171168
        %v595 = vunpack.c.0.s8 %v594
        %v596 = vlaneseq
        %v597 = vshrl.u32 %v596, 7
        %v598 = vsub.s32 %v595, %v597
        %v599 = vrot.slane %v585, %v598
        %v600 = vcombine.low %v592, %v599
        %v602 = vunpack.c.l.s4 1966171168
        %v603 = vunpack.c.0.s8 %v602
        %v604 = vlaneseq
        %v605 = vshrl.u32 %v604, 7
        %v606 = vsub.s32 %v603, %v605
        %v607 = vrot.slane %v600, %v606
        %608 = vset.pattern.permute.xlu0 0
        %609 = vperm.xlu0 %608, %v607
        %v610 = vpop.permute.xlu0 %609
        %v611 = vlaneseq
        %v612 = vshrl.u32 %v611, 7
        %v613 = vsub.s32 %v346, %v612
        %v614 = vrot.slane %v610, %v613
        %v616 = vunpack.c.l.s4 1966171168
        %v617 = vunpack.c.0.s8 %v616
        %v618 = vlaneseq
        %v619 = vshrl.u32 %v618, 7
        %v620 = vsub.s32 %v617, %v619
        %v621 = vrot.slane %v614, %v620
        %v623 = vunpack.c.l.s4 1966171168
        %v624 = vunpack.c.0.s8 %v623
        %v625 = vlaneseq
        %v626 = vshrl.u32 %v625, 7
        %v627 = vsub.s32 %v624, %v626
        %v628 = vrot.slane %v621, %v627
        %v630 = vmul.f32 %v211, %v628
        %v632 = vlaneseq
        %v633 = vshrl.u32 %v632, 7
        %v634 = vsub.s32 0, %v633
        %v635 = vrot.slane %v630, %v634
        %637 = vbcast.lane.b32.xlu0 %v635, 256
        %v638 = vpop.permute.xlu0 %637
        %v640 = vadd.f32 %v553, %v638
        %v641 = vsel %vm377, %v549, -inf
        %642 = vmax.xlane.f32.xlu0 %v641
        %v643 = vpop.xlane.xlu0 %642
        %644 = vrot.lane.b32.xlu0 %v560, 120
        %v645 = vpop.permute.xlu0 %644
        %v647 = vsel %vm284, %v645, 0.0
        %648 = vadd.xlane.f32.xlu0 %v647
        %v649 = vpop.xlane.xlu0 %648
        %v650 = vmul.f32 %v649, 0.015625
        %v651 = vsub.f32 %v650, %v643
        %v653 = vlaneseq
        %v654 = vshrl.u32 %v653, 7
        %v655 = vsub.s32 0, %v654
        %v656 = vrot.slane %v651, %v655
        %v657 = vlaneseq
        %v658 = vshrl.u32 %v657, 7
        %v659 = vsub.s32 1, %v658
        %v660 = vrot.slane %v651, %v659
        %v661 = vlaneseq
        %v662 = vshrl.u32 %v661, 7
        %v663 = vsub.s32 2, %v662
        %v664 = vrot.slane %v651, %v663
        %v665 = vlaneseq
        %v666 = vshrl.u32 %v665, 7
        %v667 = vsub.s32 3, %v666
        %v668 = vrot.slane %v651, %v667
        %v669 = vcombine.low %v656, %v660
        %v670 = vcombine.low %v664, %v668
        %v672 = vunpack.c.l.s4 1966171168
        %v673 = vunpack.c.0.s8 %v672
        %v674 = vlaneseq
        %v675 = vshrl.u32 %v674, 7
        %v676 = vsub.s32 %v673, %v675
        %v677 = vrot.slane %v669, %v676
        %v679 = vunpack.c.l.s4 1966171168
        %v680 = vunpack.c.0.s8 %v679
        %v681 = vlaneseq
        %v682 = vshrl.u32 %v681, 7
        %v683 = vsub.s32 %v680, %v682
        %v684 = vrot.slane %v670, %v683
        %v685 = vcombine.low %v677, %v684
        %v687 = vunpack.c.l.s4 1966171168
        %v688 = vunpack.c.0.s8 %v687
        %v689 = vlaneseq
        %v690 = vshrl.u32 %v689, 7
        %v691 = vsub.s32 %v688, %v690
        %v692 = vrot.slane %v685, %v691
        %693 = vset.pattern.permute.xlu0 0
        %694 = vperm.xlu0 %693, %v692
        %v695 = vpop.permute.xlu0 %694
        %v696 = vlaneseq
        %v697 = vshrl.u32 %v696, 7
        %v698 = vsub.s32 %v346, %v697
        %v699 = vrot.slane %v695, %v698
        %v701 = vunpack.c.l.s4 1966171168
        %v702 = vunpack.c.0.s8 %v701
        %v703 = vlaneseq
        %v704 = vshrl.u32 %v703, 7
        %v705 = vsub.s32 %v702, %v704
        %v706 = vrot.slane %v699, %v705
        %v708 = vunpack.c.l.s4 1966171168
        %v709 = vunpack.c.0.s8 %v708
        %v710 = vlaneseq
        %v711 = vshrl.u32 %v710, 7
        %v712 = vsub.s32 %v709, %v711
        %v713 = vrot.slane %v706, %v712
        %v715 = vmul.f32 %v211, %v713
        %v717 = vlaneseq
        %v718 = vshrl.u32 %v717, 7
        %v719 = vsub.s32 0, %v718
        %v720 = vrot.slane %v715, %v719
        %722 = vbcast.lane.b32.xlu0 %v720, 256
        %v723 = vpop.permute.xlu0 %722
        %v725 = vadd.f32 %v643, %v723
        %727 = vset.pattern.permute.xlu0 0
        %728 = vperm.xlu0 %727, %v640
        %v729 = vpop.permute.xlu0 %728
        %v730 = vlaneseq
        %v731 = vshrl.u32 %v730, 7
        %v732 = vsub.s32 %v346, %v731
        %v733 = vrot.slane %v729, %v732
        %736 = vset.pattern.permute.xlu0 0
        %737 = vperm.xlu0 %736, %v725
        %v738 = vpop.permute.xlu0 %737
        %v739 = vlaneseq
        %v740 = vshrl.u32 %v739, 7
        %v741 = vsub.s32 %v346, %v740
        %v742 = vrot.slane %v738, %v741
        %v744 = vsel %vm481, %v733, %v742
        %vm745 = vcmask 25600
        %746 = vst.msk [vmem:[%s204] sm:$0x3] %vm745, %v482
        %747 = vst.msk [vmem:[%s204 + $0x2] sm:$0x3] %vm745, %v744
        %s748 = sand.u32 %s106, 1
        %s749 = scalar_lea.sflag [#allocation4], %s748
        %s750 = sand.u32 %s106, 1
        %s751 = smul.addr %s750, 4
        %s752 = scalar_lea.vmem [#allocation5], %s751
        // Predicated region
        $region33: #{tpu_custom_call.1} parent=27 // pred_check
          %p753 = pneg %p116
        $region34: #{tpu_custom_call.1} parent=27 // pred_check_branch
          %755 = sbr.rel (%p753) target = $region36
        $region35: #{tpu_custom_call.1} parent=27 // pred_region
          %s756 = smul.u32 2, %s26
          %s758 = ssub.s32 64, 64
          %759 = vsyncadd %s749, %s758
          %s760 = sadd.s32 %s25, %s756
          %s761 = smul.addr %s24, 2
          %s762 = sadd.s32 %s760, %s761
          %s763 = smul.addr %s762, 32
          %s764 = scalar_lea.hbm %s2, %s763
          %s765 = sshll.u32 %s752, 4
          %s766 = int_to_ptr.vmem [resolvable:$true] %s765
          %771 = dma.vmem_to_hbm [thread:$0]  %s766, 64, %s764, %s749, 32, 32, 2
        $region36: #{tpu_custom_call.1} parent=27 // pred_fallthru
          _
      $region28: #{tpu_custom_call.1} parent=5 // pred_fallthru
        _
      %p772 = scmp.le.s32.totalorder 2, %s14
      // Predicated region
      $region37: #{tpu_custom_call.1} parent=5 // pred_check
        %p773 = pneg %p772
      $region38: #{tpu_custom_call.1} parent=5 // pred_check_branch
        %775 = sbr.rel (%p773) target = $region40
      $region39: #{tpu_custom_call.1} parent=5 // pred_region
        %s776 = ssub.s32 %s14, 2
        // Predicated region
        $region41: #{tpu_custom_call.1} parent=39 // pred_check
          %p777 = pneg %p122
        $region42: #{tpu_custom_call.1} parent=39 // pred_check_branch
          %779 = sbr.rel (%p777) target = $region44
        $region43: #{tpu_custom_call.1} parent=39 // pred_region
          %s780 = sand.u32 %s107, 1
          %s781 = scalar_lea.sflag [#allocation4], %s780
          %s782 = sand.u32 %s107, 1
          %s783 = smul.addr %s782, 4
          %s784 = scalar_lea.vmem [#allocation5], %s783
          %785 = dma.done %s781, 64
        $region44: #{tpu_custom_call.1} parent=39 // pred_fallthru
          _
      $region40: #{tpu_custom_call.1} parent=5 // pred_fallthru
        _
    $region6: #{tpu_custom_call.1} parent=1 // loop_footer
      %s18 = sadd.s32 1, %s14
    $region7: #{tpu_custom_call.1} parent=1 // loop_footer_branch
      %13 = sbr.rel target = $region3
    $region8: #{tpu_custom_call.1} parent=1 // loop_exit
      _
    %786 = vsyncpa [#allocation3], 1
    %s787 = scalar_lea.sflag [#allocation3], 1
    %788 = vsyncpa %s787, 1
    %789 = vsyncpa [#allocation4], 1
    %s790 = scalar_lea.sflag [#allocation4], 1
    %791 = vsyncpa %s790, 1

</llo_original>
